<compile_context>
chip_gen: v7x
topology: tpu7x:2x2x1
jax: 0.10.0
libtpu: 0.0.40
codegen_flags: <defaults>
</compile_context>

<pallas_src>
import functools

import jax
import jax.numpy as jnp
import numpy as np
from jax.experimental import pallas as pl
from jax.experimental.pallas import tpu as pltpu

_BN_EPS = 1e-5
_LEAKY_SLOPE = 0.2


def _round_up(x, m):
    return ((x + m - 1) // m) * m


def _vmem_limit_bytes():
    """Per-generation scoped-VMEM budget (~48 MiB on v7x, up to 96 MiB v5e/v6e)."""
    try:
        cap = int(pltpu.get_tpu_info().vmem_capacity_bytes)
    except Exception:  # query unavailable -> conservative (v7x-safe) default
        cap = 64 * 1024 * 1024
    return min((cap * 3) // 4, 96 * 1024 * 1024)


def _pick_tile(C_out, L_out):
    """Lane-dense L tile (multiple of 128).  The cap scales down with C_out so
    the f32 (C_out, TL) accumulator tile (and each per-tap dot result) stays
    around <= 128 KiB, bounding vreg pressure / scratch traffic."""
    budget_cols = (128 * 1024 // 4) // max(C_out, 1)
    cap = max(256, min(2048, (budget_cols // 128) * 128))
    return min(cap, _round_up(L_out, 128))


def _conv_stats_kernel(x_ref, w_ref, sum_ref, sq_ref, acc_ref, *,
                       K, dilation, TL, halo_pad, L_out):
    """Pass 1 (stats only).

    x_ref   : (C_in, L_x_ext)   one zero-padded batch row, compute dtype
    w_ref   : (K, C_out, C_in)  weights, tap-major, compute dtype
    sum_ref : (C_out, 1)        f32 running per-row sum (resident across t)
    sq_ref  : (C_out, 1)        f32 running per-row sum of squares
    acc_ref : (C_out, TL)       f32 VMEM scratch conv accumulator
    """
    t = pl.program_id(1)

    @pl.when(t == 0)
    def _():
        sum_ref[...] = jnp.zeros_like(sum_ref)
        sq_ref[...] = jnp.zeros_like(sq_ref)

    start = pl.multiple_of(t * TL, TL)            # lane-aligned window start
    xw = x_ref[:, pl.ds(start, TL + halo_pad)]    # (C_in, TL + halo_pad)

    # Conv tile as K shifted matmuls; accumulate in VMEM scratch (no big live
    # register value, so no spill cliff at large C_out * TL).
    acc_ref[...] = jnp.dot(w_ref[0], xw[:, 0:TL],
                           preferred_element_type=jnp.float32)
    for k in range(1, K):                          # static unroll; K is small
        acc_ref[...] += jnp.dot(w_ref[k], xw[:, k * dilation:k * dilation + TL],
                                preferred_element_type=jnp.float32)

    acc = acc_ref[...]
    lane = jax.lax.broadcasted_iota(jnp.int32, (1, TL), 1)
    acc_m = jnp.where((lane + t * TL) < L_out, acc, 0.0)   # mask L padding cols
    sum_ref[...] += jnp.sum(acc_m, axis=1, keepdims=True)  # lane-axis (XLU) reduce
    sq_ref[...] += jnp.sum(acc_m * acc, axis=1, keepdims=True)


def _conv_bn_act_kernel(x_ref, w_ref, scale_ref, shift_ref, o_ref, acc_ref, *,
                        K, dilation, TL, halo_pad):
    """Pass 2 (fused): recompute conv tile (identical f32 accumulation as pass 1),
    apply per-channel BN scale/shift, LeakyReLU(0.2), single NCL output write."""
    t = pl.program_id(1)
    start = pl.multiple_of(t * TL, TL)
    xw = x_ref[:, pl.ds(start, TL + halo_pad)]

    acc_ref[...] = jnp.dot(w_ref[0], xw[:, 0:TL],
                           preferred_element_type=jnp.float32)
    for k in range(1, K):
        acc_ref[...] += jnp.dot(w_ref[k], xw[:, k * dilation:k * dilation + TL],
                                preferred_element_type=jnp.float32)

    z = acc_ref[...] * scale_ref[...] + shift_ref[...]
    o_ref[...] = jnp.where(z > 0, z, _LEAKY_SLOPE * z).astype(o_ref.dtype)


@functools.partial(jax.jit, static_argnames=("kernel", "stride", "padding",
                                             "dilation", "compute_dtype"))
def conv_block_forward(x, weight, bias, gamma, beta, *, kernel, stride=1,
                       padding=0, dilation=1, compute_dtype=jnp.float32):
    """x: (N, C_in, L). weight: (C_out, C_in, K). Returns (N, C_out, L_out[-1 if K even])."""
    del bias  # conv bias cancels exactly under training-mode BatchNorm.
    if stride != 1:
        # TODO(synk): strided Conv1d path not implemented (module default stride=1).
        raise NotImplementedError("stride != 1 not implemented")

    N, C_in, L = x.shape
    C_out = weight.shape[0]
    K = kernel

    L_out = L + 2 * padding - dilation * (K - 1)       # stride == 1
    if L_out <= 0:
        raise ValueError("non-positive conv output length")
    L_final = L_out - 1 if K % 2 == 0 else L_out

    TL = _pick_tile(C_out, L_out)
    T = -(-L_out // TL)
    L_out_pad = T * TL

    halo = (K - 1) * dilation
    halo_pad = _round_up(halo, 128) if halo > 0 else 0
    L_x_ext = L_out_pad + halo_pad                     # covers every tile's window

    # Zero-pad x once (conv padding + tile/halo padding) and cast matmul operands
    # to the compute dtype.  bf16 halves x HBM reads on every generation (the MXU
    # takes bf16 natively on v5e too); accumulation and all elementwise work stay
    # f32, which sidesteps v5e's missing bf16 VPU/EUP.
    x_ext = jnp.pad(
        x, ((0, 0), (0, 0), (padding, L_x_ext - padding - L))).astype(compute_dtype)
    w_taps = jnp.transpose(weight, (2, 0, 1)).astype(compute_dtype)  # (K, C_out, C_in)

    vmem_limit = _vmem_limit_bytes()

    # ---- pass 1: per-row BN partial statistics (no conv-output HBM write) ----
    stats_kernel = functools.partial(_conv_stats_kernel, K=K, dilation=dilation,
                                     TL=TL, halo_pad=halo_pad, L_out=L_out)
    psum, psq = pl.pallas_call(
        stats_kernel,
        grid=(N, T),
        in_specs=[
            # Whole zero-padded row; its block index depends only on n, so the
            # DMA re-runs once per batch row.
            # TODO(synk): L-tile x with a manual halo DMA if C_in*L_x_ext (x2
            # buffers) ever approaches the scoped-VMEM budget (v7x: 64 MiB).
            pl.BlockSpec((None, C_in, L_x_ext), lambda n, t: (n, 0, 0)),
            pl.BlockSpec((K, C_out, C_in), lambda n, t: (0, 0, 0)),
        ],
        out_specs=[
            # Block index constant across t -> stats stay VMEM-resident and are
            # written back to HBM once per batch row (no per-tile tiny DMAs).
            pl.BlockSpec((None, C_out, 1), lambda n, t: (n, 0, 0)),
            pl.BlockSpec((None, C_out, 1), lambda n, t: (n, 0, 0)),
        ],
        out_shape=[
            jax.ShapeDtypeStruct((N, C_out, 1), jnp.float32),
            jax.ShapeDtypeStruct((N, C_out, 1), jnp.float32),
        ],
        scratch_shapes=[pltpu.VMEM((C_out, TL), jnp.float32)],
        compiler_params=pltpu.CompilerParams(
            dimension_semantics=("parallel", "arbitrary"),
            vmem_limit_bytes=vmem_limit),
    )(x_ext, w_taps)

    # Per-channel stats finalization: done ONCE (tiny XLA reduction over N).
    # Var = E[y^2] - E[y]^2 in f32, clamped at 0.
    count = jnp.float32(N * L_out)
    s = jnp.sum(psum, axis=0)                 # (C_out, 1)
    sq = jnp.sum(psq, axis=0)                 # (C_out, 1)
    mean = s / count
    var = jnp.maximum(sq / count - mean * mean, 0.0)
    inv_std = jax.lax.rsqrt(var + _BN_EPS)
    scale = gamma.astype(jnp.float32).reshape(C_out, 1) * inv_std
    shift = beta.astype(jnp.float32).reshape(C_out, 1) - mean * scale

    # ---- pass 2: fused conv-recompute + BN scale/shift + LeakyReLU ----
    fused_kernel = functools.partial(_conv_bn_act_kernel, K=K, dilation=dilation,
                                     TL=TL, halo_pad=halo_pad)
    out_pad = pl.pallas_call(
        fused_kernel,
        grid=(N, T),
        in_specs=[
            pl.BlockSpec((None, C_in, L_x_ext), lambda n, t: (n, 0, 0)),
            pl.BlockSpec((K, C_out, C_in), lambda n, t: (0, 0, 0)),
            pl.BlockSpec((C_out, 1), lambda n, t: (0, 0)),
            pl.BlockSpec((C_out, 1), lambda n, t: (0, 0)),
        ],
        out_specs=pl.BlockSpec((None, C_out, TL), lambda n, t: (n, 0, t)),
        out_shape=jax.ShapeDtypeStruct((N, C_out, L_out_pad), x.dtype),
        scratch_shapes=[pltpu.VMEM((C_out, TL), jnp.float32)],
        compiler_params=pltpu.CompilerParams(
            dimension_semantics=("parallel", "parallel"),
            vmem_limit_bytes=vmem_limit),
    )(x_ext, w_taps, scale, shift)

    # Output is already NCL: no transpose, just drop the L padding (and the extra
    # column for even K — PyTorch slices AFTER BN, so BN stats include it, which
    # is exactly what the masked stats above do).
    return out_pad[:, :, :L_final]


def _reference(x, weight, bias, gamma, beta, *, kernel, stride, padding, dilation):
    """Pure-JAX reference mirroring the PyTorch module (training-mode BN)."""
    y = jax.lax.conv_general_dilated(
        x, weight, window_strides=(stride,), padding=[(padding, padding)],
        rhs_dilation=(dilation,), dimension_numbers=("NCH", "OIH", "NCH"))
    y = y + bias[None, :, None]
    mean = jnp.mean(y, axis=(0, 2), keepdims=True)
    var = jnp.mean((y - mean) ** 2, axis=(0, 2), keepdims=True)
    y = (y - mean) * jax.lax.rsqrt(var + _BN_EPS)
    y = gamma[None, :, None] * y + beta[None, :, None]
    y = jnp.where(y > 0, y, _LEAKY_SLOPE * y)
    if kernel % 2 == 0:
        y = y[:, :, :-1]
    return y


if __name__ == "__main__":
    key = jax.random.PRNGKey(0)

    N, C_in, L = 2, 4, 16
    C_out = 8

    ok = True
    # Test the odd-kernel path and the even-kernel (drop-last-column) path,
    # each with the exact f32 path and the bf16-compute fast path.
    for kernel, padding in [(3, 1), (4, 2)]:
        kx, kw, kb, kg, kbe = jax.random.split(jax.random.fold_in(key, kernel), 5)
        x = jax.random.normal(kx, (N, C_in, L), dtype=jnp.float32)
        fan_in = C_in * kernel
        bound = 1.0 / np.sqrt(fan_in)
        weight = jax.random.uniform(kw, (C_out, C_in, kernel), jnp.float32, -bound, bound)
        bias = jax.random.uniform(kb, (C_out,), jnp.float32, -bound, bound)
        gamma = 1.0 + 0.1 * jax.random.normal(kg, (C_out,), jnp.float32)
        beta = 0.1 * jax.random.normal(kbe, (C_out,), jnp.float32)

        ref = _reference(x, weight, bias, gamma, beta,
                         kernel=kernel, stride=1, padding=padding, dilation=1)

        out32 = jax.block_until_ready(conv_block_forward(
            x, weight, bias, gamma, beta, kernel=kernel, stride=1,
            padding=padding, dilation=1, compute_dtype=jnp.float32))
        if not np.allclose(np.asarray(out32), np.asarray(ref), atol=1e-4, rtol=1e-4):
            ok = False

        outbf = jax.block_until_ready(conv_block_forward(
            x, weight, bias, gamma, beta, kernel=kernel, stride=1,
            padding=padding, dilation=1, compute_dtype=jnp.bfloat16))
        if not np.allclose(np.asarray(outbf), np.asarray(ref), atol=5e-2, rtol=5e-2):
            ok = False

    if ok:
        print("KERNEL_OK")
</pallas_src>

<mosaic_0001>
module attributes {stable_mosaic.version = 11 : i64} {
  func.func @_conv_stats_kernel(%arg0: i32, %arg1: i32, %arg2: memref<1x4x256xf32, #tpu.memory_space<vmem>>, %arg3: memref<3x8x4xf32, #tpu.memory_space<vmem>>, %arg4: memref<1x8x1xf32, #tpu.memory_space<vmem>>, %arg5: memref<1x8x1xf32, #tpu.memory_space<vmem>>, %arg6: memref<8x128xf32, #tpu.memory_space<vmem>>) attributes {dimension_semantics = [#tpu.dimension_semantics<parallel>, #tpu.dimension_semantics<arbitrary>], iteration_bounds = array<i64: 2, 1>, scalar_prefetch = 0 : i64, scratch_operands = 1 : i64, tpu.core_type = #tpu.core_type<tc>, window_params = [{transform_indices = @transform_0, window_bounds = array<i64: 1, 4, 256>}, {pipeline_mode = #tpu.pipeline_mode<synchronous>, transform_indices = @transform_1, window_bounds = array<i64: 3, 8, 4>}, {transform_indices = @transform_2, window_bounds = array<i64: 1, 8, 1>}, {transform_indices = @transform_3, window_bounds = array<i64: 1, 8, 1>}]} {
    %c0_i32 = arith.constant 0 : i32
    %0 = arith.cmpi eq, %arg1, %c0_i32 : i32
    %1 = arith.extui %0 : i1 to i32
    %c0_i32_0 = arith.constant 0 : i32
    %2 = arith.cmpi ne, %1, %c0_i32_0 : i32
    scf.if %2 {
      %cst_39 = arith.constant 0.000000e+00 : f32
      %55 = vector.broadcast %cst_39 : f32 to vector<8x1xf32>
      %c0_40 = arith.constant 0 : index
      %c0_41 = arith.constant 0 : index
      %c0_42 = arith.constant 0 : index
      %56 = vector.load %arg4[%c0_40, %c0_41, %c0_42] : memref<1x8x1xf32, #tpu.memory_space<vmem>>, vector<1x8x1xf32>
      %57 = vector.shape_cast %56 : vector<1x8x1xf32> to vector<8x1xf32>
      %58 = vector.shape_cast %55 : vector<8x1xf32> to vector<1x8x1xf32>
      tpu.vector_store %arg4[%c0_40, %c0_41, %c0_42], %58 {strides = array<i32>} : memref<1x8x1xf32, #tpu.memory_space<vmem>>, vector<1x8x1xf32>,
      %cst_43 = arith.constant 0.000000e+00 : f32
      %59 = vector.broadcast %cst_43 : f32 to vector<8x1xf32>
      %c0_44 = arith.constant 0 : index
      %c0_45 = arith.constant 0 : index
      %c0_46 = arith.constant 0 : index
      %60 = vector.load %arg5[%c0_44, %c0_45, %c0_46] : memref<1x8x1xf32, #tpu.memory_space<vmem>>, vector<1x8x1xf32>
      %61 = vector.shape_cast %60 : vector<1x8x1xf32> to vector<8x1xf32>
      %62 = vector.shape_cast %59 : vector<8x1xf32> to vector<1x8x1xf32>
      tpu.vector_store %arg5[%c0_44, %c0_45, %c0_46], %62 {strides = array<i32>} : memref<1x8x1xf32, #tpu.memory_space<vmem>>, vector<1x8x1xf32>,
    } else {
    }
    %c128_i32 = arith.constant 128 : i32
    %3 = arith.muli %arg1, %c128_i32 : i32
    %4 = tpu.assume_multiple %3, 128 : i32
    %c0 = arith.constant 0 : index
    %c0_1 = arith.constant 0 : index
    %5 = arith.index_cast %4 : i32 to index
    %6 = vector.load %arg2[%c0, %c0_1, %5] : memref<1x4x256xf32, #tpu.memory_space<vmem>>, vector<1x4x256xf32>
    %7 = vector.shape_cast %6 : vector<1x4x256xf32> to vector<4x256xf32>
    %c0_2 = arith.constant 0 : index
    %c0_3 = arith.constant 0 : index
    %c0_4 = arith.constant 0 : index
    %8 = vector.load %arg3[%c0_2, %c0_3, %c0_4] : memref<3x8x4xf32, #tpu.memory_space<vmem>>, vector<1x8x4xf32>
    %9 = vector.shape_cast %8 : vector<1x8x4xf32> to vector<8x4xf32>
    %10 = vector.extract_strided_slice %7 {offsets = [0, 0], sizes = [4, 128], strides = [1, 1]} : vector<4x256xf32> to vector<4x128xf32>
    %cst = arith.constant dense<0.000000e+00> : vector<8x128xf32>
    %11 = tpu.matmul %9, %10, %cst {dimension_numbers = #tpu.dot_dimension_numbers<[1], [0], [0], [1], [0, 0, 1, 1], [], []>} : vector<8x4xf32>, vector<4x128xf32>, vector<8x128xf32> -> vector<8x128xf32>
    %c0_5 = arith.constant 0 : index
    %c0_6 = arith.constant 0 : index
    %12 = vector.load %arg6[%c0_5, %c0_6] : memref<8x128xf32, #tpu.memory_space<vmem>>, vector<8x128xf32>
    tpu.vector_store %arg6[%c0_5, %c0_6], %11 {strides = array<i32>} : memref<8x128xf32, #tpu.memory_space<vmem>>, vector<8x128xf32>,
    %c0_7 = arith.constant 0 : index
    %c0_8 = arith.constant 0 : index
    %13 = vector.load %arg6[%c0_7, %c0_8] : memref<8x128xf32, #tpu.memory_space<vmem>>, vector<8x128xf32>
    %c1 = arith.constant 1 : index
    %c0_9 = arith.constant 0 : index
    %c0_10 = arith.constant 0 : index
    %14 = vector.load %arg3[%c1, %c0_9, %c0_10] : memref<3x8x4xf32, #tpu.memory_space<vmem>>, vector<1x8x4xf32>
    %15 = vector.shape_cast %14 : vector<1x8x4xf32> to vector<8x4xf32>
    %16 = vector.extract_strided_slice %7 {offsets = [0, 1], sizes = [4, 128], strides = [1, 1]} : vector<4x256xf32> to vector<4x128xf32>
    %cst_11 = arith.constant dense<0.000000e+00> : vector<8x128xf32>
    %17 = tpu.matmul %15, %16, %cst_11 {dimension_numbers = #tpu.dot_dimension_numbers<[1], [0], [0], [1], [0, 0, 1, 1], [], []>} : vector<8x4xf32>, vector<4x128xf32>, vector<8x128xf32> -> vector<8x128xf32>
    %18 = arith.addf %13, %17 : vector<8x128xf32>
    %c0_12 = arith.constant 0 : index
    %c0_13 = arith.constant 0 : index
    %19 = vector.load %arg6[%c0_12, %c0_13] : memref<8x128xf32, #tpu.memory_space<vmem>>, vector<8x128xf32>
    tpu.vector_store %arg6[%c0_12, %c0_13], %18 {strides = array<i32>} : memref<8x128xf32, #tpu.memory_space<vmem>>, vector<8x128xf32>,
    %c0_14 = arith.constant 0 : index
    %c0_15 = arith.constant 0 : index
    %20 = vector.load %arg6[%c0_14, %c0_15] : memref<8x128xf32, #tpu.memory_space<vmem>>, vector<8x128xf32>
    %c2 = arith.constant 2 : index
    %c0_16 = arith.constant 0 : index
    %c0_17 = arith.constant 0 : index
    %21 = vector.load %arg3[%c2, %c0_16, %c0_17] : memref<3x8x4xf32, #tpu.memory_space<vmem>>, vector<1x8x4xf32>
    %22 = vector.shape_cast %21 : vector<1x8x4xf32> to vector<8x4xf32>
    %23 = vector.extract_strided_slice %7 {offsets = [0, 2], sizes = [4, 128], strides = [1, 1]} : vector<4x256xf32> to vector<4x128xf32>
    %cst_18 = arith.constant dense<0.000000e+00> : vector<8x128xf32>
    %24 = tpu.matmul %22, %23, %cst_18 {dimension_numbers = #tpu.dot_dimension_numbers<[1], [0], [0], [1], [0, 0, 1, 1], [], []>} : vector<8x4xf32>, vector<4x128xf32>, vector<8x128xf32> -> vector<8x128xf32>
    %25 = arith.addf %20, %24 : vector<8x128xf32>
    %c0_19 = arith.constant 0 : index
    %c0_20 = arith.constant 0 : index
    %26 = vector.load %arg6[%c0_19, %c0_20] : memref<8x128xf32, #tpu.memory_space<vmem>>, vector<8x128xf32>
    tpu.vector_store %arg6[%c0_19, %c0_20], %25 {strides = array<i32>} : memref<8x128xf32, #tpu.memory_space<vmem>>, vector<8x128xf32>,
    %c0_21 = arith.constant 0 : index
    %c0_22 = arith.constant 0 : index
    %27 = vector.load %arg6[%c0_21, %c0_22] : memref<8x128xf32, #tpu.memory_space<vmem>>, vector<8x128xf32>
    %28 = tpu.iota {dimensions = array<i32: 1>} : vector<1x128xi32>
    %c128_i32_23 = arith.constant 128 : i32
    %29 = arith.muli %arg1, %c128_i32_23 : i32
    %30 = vector.broadcast %29 : i32 to vector<1x128xi32>
    %31 = arith.addi %28, %30 : vector<1x128xi32>
    %c16_i32 = arith.constant 16 : i32
    %32 = vector.broadcast %c16_i32 : i32 to vector<1x128xi32>
    %33 = arith.cmpi slt, %31, %32 : vector<1x128xi32>
    %cst_24 = arith.constant 0.000000e+00 : f32
    %34 = vector.shape_cast %33 : vector<1x128xi1> to vector<1x128xi1>
    %35 = vector.broadcast %34 : vector<1x128xi1> to vector<8x128xi1>
    %36 = vector.broadcast %cst_24 : f32 to vector<8x128xf32>
    %37 = arith.select %35, %27, %36 : vector<8x128xi1>, vector<8x128xf32>
    %c0_25 = arith.constant 0 : index
    %c0_26 = arith.constant 0 : index
    %c0_27 = arith.constant 0 : index
    %38 = vector.load %arg4[%c0_25, %c0_26, %c0_27] : memref<1x8x1xf32, #tpu.memory_space<vmem>>, vector<1x8x1xf32>
    %39 = vector.shape_cast %38 : vector<1x8x1xf32> to vector<8x1xf32>
    %cst_28 = arith.constant dense<0.000000e+00> : vector<8xf32>
    %40 = vector.multi_reduction <add>, %37, %cst_28 [1] : vector<8x128xf32> to vector<8xf32>
    %41 = vector.shape_cast %40 : vector<8xf32> to vector<8x1xf32>
    %42 = arith.addf %39, %41 : vector<8x1xf32>
    %c0_29 = arith.constant 0 : index
    %c0_30 = arith.constant 0 : index
    %c0_31 = arith.constant 0 : index
    %43 = vector.load %arg4[%c0_29, %c0_30, %c0_31] : memref<1x8x1xf32, #tpu.memory_space<vmem>>, vector<1x8x1xf32>
    %44 = vector.shape_cast %43 : vector<1x8x1xf32> to vector<8x1xf32>
    %45 = vector.shape_cast %42 : vector<8x1xf32> to vector<1x8x1xf32>
    tpu.vector_store %arg4[%c0_29, %c0_30, %c0_31], %45 {strides = array<i32>} : memref<1x8x1xf32, #tpu.memory_space<vmem>>, vector<1x8x1xf32>,
    %c0_32 = arith.constant 0 : index
    %c0_33 = arith.constant 0 : index
    %c0_34 = arith.constant 0 : index
    %46 = vector.load %arg5[%c0_32, %c0_33, %c0_34] : memref<1x8x1xf32, #tpu.memory_space<vmem>>, vector<1x8x1xf32>
    %47 = vector.shape_cast %46 : vector<1x8x1xf32> to vector<8x1xf32>
    %48 = arith.mulf %37, %27 : vector<8x128xf32>
    %cst_35 = arith.constant dense<0.000000e+00> : vector<8xf32>
    %49 = vector.multi_reduction <add>, %48, %cst_35 [1] : vector<8x128xf32> to vector<8xf32>
    %50 = vector.shape_cast %49 : vector<8xf32> to vector<8x1xf32>
    %51 = arith.addf %47, %50 : vector<8x1xf32>
    %c0_36 = arith.constant 0 : index
    %c0_37 = arith.constant 0 : index
    %c0_38 = arith.constant 0 : index
    %52 = vector.load %arg5[%c0_36, %c0_37, %c0_38] : memref<1x8x1xf32, #tpu.memory_space<vmem>>, vector<1x8x1xf32>
    %53 = vector.shape_cast %52 : vector<1x8x1xf32> to vector<8x1xf32>
    %54 = vector.shape_cast %51 : vector<8x1xf32> to vector<1x8x1xf32>
    tpu.vector_store %arg5[%c0_36, %c0_37, %c0_38], %54 {strides = array<i32>} : memref<1x8x1xf32, #tpu.memory_space<vmem>>, vector<1x8x1xf32>,
    return
  }
  func.func @transform_0(%arg0: i32, %arg1: i32) -> (i32, i32, i32) {
    %c0_i32 = arith.constant 0 : i32
    %c0_i32_0 = arith.constant 0 : i32
    %c0_i32_1 = arith.constant 0 : i32
    return %arg0, %c0_i32, %c0_i32_0 : i32, i32, i32
  }
  func.func @transform_1(%arg0: i32, %arg1: i32) -> (i32, i32, i32) {
    %c0_i32 = arith.constant 0 : i32
    %c0_i32_0 = arith.constant 0 : i32
    %c0_i32_1 = arith.constant 0 : i32
    %c0_i32_2 = arith.constant 0 : i32
    return %c0_i32, %c0_i32_0, %c0_i32_1 : i32, i32, i32
  }
  func.func @transform_2(%arg0: i32, %arg1: i32) -> (i32, i32, i32) {
    %c0_i32 = arith.constant 0 : i32
    %c0_i32_0 = arith.constant 0 : i32
    %c0_i32_1 = arith.constant 0 : i32
    return %arg0, %c0_i32, %c0_i32_0 : i32, i32, i32
  }
  func.func @transform_3(%arg0: i32, %arg1: i32) -> (i32, i32, i32) {
    %c0_i32 = arith.constant 0 : i32
    %c0_i32_0 = arith.constant 0 : i32
    %c0_i32_1 = arith.constant 0 : i32
    return %arg0, %c0_i32, %c0_i32_0 : i32, i32, i32
  }
}

module attributes {stable_mosaic.version = 11 : i64} {
  func.func @_conv_bn_act_kernel(%arg0: i32, %arg1: i32, %arg2: memref<1x4x256xf32, #tpu.memory_space<vmem>>, %arg3: memref<3x8x4xf32, #tpu.memory_space<vmem>>, %arg4: memref<8x1xf32, #tpu.memory_space<vmem>>, %arg5: memref<8x1xf32, #tpu.memory_space<vmem>>, %arg6: memref<1x8x128xf32, #tpu.memory_space<vmem>>, %arg7: memref<8x128xf32, #tpu.memory_space<vmem>>) attributes {dimension_semantics = [#tpu.dimension_semantics<parallel>, #tpu.dimension_semantics<parallel>], iteration_bounds = array<i64: 2, 1>, scalar_prefetch = 0 : i64, scratch_operands = 1 : i64, tpu.core_type = #tpu.core_type<tc>, window_params = [{transform_indices = @transform_0, window_bounds = array<i64: 1, 4, 256>}, {pipeline_mode = #tpu.pipeline_mode<synchronous>, transform_indices = @transform_1, window_bounds = array<i64: 3, 8, 4>}, {pipeline_mode = #tpu.pipeline_mode<synchronous>, transform_indices = @transform_2, window_bounds = array<i64: 8, 1>}, {pipeline_mode = #tpu.pipeline_mode<synchronous>, transform_indices = @transform_3, window_bounds = array<i64: 8, 1>}, {transform_indices = @transform_4, window_bounds = array<i64: 1, 8, 128>}]} {
    %c128_i32 = arith.constant 128 : i32
    %0 = arith.muli %arg1, %c128_i32 : i32
    %1 = tpu.assume_multiple %0, 128 : i32
    %c0 = arith.constant 0 : index
    %c0_0 = arith.constant 0 : index
    %2 = arith.index_cast %1 : i32 to index
    %3 = vector.load %arg2[%c0, %c0_0, %2] : memref<1x4x256xf32, #tpu.memory_space<vmem>>, vector<1x4x256xf32>
    %4 = vector.shape_cast %3 : vector<1x4x256xf32> to vector<4x256xf32>
    %c0_1 = arith.constant 0 : index
    %c0_2 = arith.constant 0 : index
    %c0_3 = arith.constant 0 : index
    %5 = vector.load %arg3[%c0_1, %c0_2, %c0_3] : memref<3x8x4xf32, #tpu.memory_space<vmem>>, vector<1x8x4xf32>
    %6 = vector.shape_cast %5 : vector<1x8x4xf32> to vector<8x4xf32>
    %7 = vector.extract_strided_slice %4 {offsets = [0, 0], sizes = [4, 128], strides = [1, 1]} : vector<4x256xf32> to vector<4x128xf32>
    %cst = arith.constant dense<0.000000e+00> : vector<8x128xf32>
    %8 = tpu.matmul %6, %7, %cst {dimension_numbers = #tpu.dot_dimension_numbers<[1], [0], [0], [1], [0, 0, 1, 1], [], []>} : vector<8x4xf32>, vector<4x128xf32>, vector<8x128xf32> -> vector<8x128xf32>
    %c0_4 = arith.constant 0 : index
    %c0_5 = arith.constant 0 : index
    %9 = vector.load %arg7[%c0_4, %c0_5] : memref<8x128xf32, #tpu.memory_space<vmem>>, vector<8x128xf32>
    tpu.vector_store %arg7[%c0_4, %c0_5], %8 {strides = array<i32>} : memref<8x128xf32, #tpu.memory_space<vmem>>, vector<8x128xf32>,
    %c0_6 = arith.constant 0 : index
    %c0_7 = arith.constant 0 : index
    %10 = vector.load %arg7[%c0_6, %c0_7] : memref<8x128xf32, #tpu.memory_space<vmem>>, vector<8x128xf32>
    %c1 = arith.constant 1 : index
    %c0_8 = arith.constant 0 : index
    %c0_9 = arith.constant 0 : index
    %11 = vector.load %arg3[%c1, %c0_8, %c0_9] : memref<3x8x4xf32, #tpu.memory_space<vmem>>, vector<1x8x4xf32>
    %12 = vector.shape_cast %11 : vector<1x8x4xf32> to vector<8x4xf32>
    %13 = vector.extract_strided_slice %4 {offsets = [0, 1], sizes = [4, 128], strides = [1, 1]} : vector<4x256xf32> to vector<4x128xf32>
    %cst_10 = arith.constant dense<0.000000e+00> : vector<8x128xf32>
    %14 = tpu.matmul %12, %13, %cst_10 {dimension_numbers = #tpu.dot_dimension_numbers<[1], [0], [0], [1], [0, 0, 1, 1], [], []>} : vector<8x4xf32>, vector<4x128xf32>, vector<8x128xf32> -> vector<8x128xf32>
    %15 = arith.addf %10, %14 : vector<8x128xf32>
    %c0_11 = arith.constant 0 : index
    %c0_12 = arith.constant 0 : index
    %16 = vector.load %arg7[%c0_11, %c0_12] : memref<8x128xf32, #tpu.memory_space<vmem>>, vector<8x128xf32>
    tpu.vector_store %arg7[%c0_11, %c0_12], %15 {strides = array<i32>} : memref<8x128xf32, #tpu.memory_space<vmem>>, vector<8x128xf32>,
    %c0_13 = arith.constant 0 : index
    %c0_14 = arith.constant 0 : index
    %17 = vector.load %arg7[%c0_13, %c0_14] : memref<8x128xf32, #tpu.memory_space<vmem>>, vector<8x128xf32>
    %c2 = arith.constant 2 : index
    %c0_15 = arith.constant 0 : index
    %c0_16 = arith.constant 0 : index
    %18 = vector.load %arg3[%c2, %c0_15, %c0_16] : memref<3x8x4xf32, #tpu.memory_space<vmem>>, vector<1x8x4xf32>
    %19 = vector.shape_cast %18 : vector<1x8x4xf32> to vector<8x4xf32>
    %20 = vector.extract_strided_slice %4 {offsets = [0, 2], sizes = [4, 128], strides = [1, 1]} : vector<4x256xf32> to vector<4x128xf32>
    %cst_17 = arith.constant dense<0.000000e+00> : vector<8x128xf32>
    %21 = tpu.matmul %19, %20, %cst_17 {dimension_numbers = #tpu.dot_dimension_numbers<[1], [0], [0], [1], [0, 0, 1, 1], [], []>} : vector<8x4xf32>, vector<4x128xf32>, vector<8x128xf32> -> vector<8x128xf32>
    %22 = arith.addf %17, %21 : vector<8x128xf32>
    %c0_18 = arith.constant 0 : index
    %c0_19 = arith.constant 0 : index
    %23 = vector.load %arg7[%c0_18, %c0_19] : memref<8x128xf32, #tpu.memory_space<vmem>>, vector<8x128xf32>
    tpu.vector_store %arg7[%c0_18, %c0_19], %22 {strides = array<i32>} : memref<8x128xf32, #tpu.memory_space<vmem>>, vector<8x128xf32>,
    %c0_20 = arith.constant 0 : index
    %c0_21 = arith.constant 0 : index
    %24 = vector.load %arg7[%c0_20, %c0_21] : memref<8x128xf32, #tpu.memory_space<vmem>>, vector<8x128xf32>
    %c0_22 = arith.constant 0 : index
    %c0_23 = arith.constant 0 : index
    %25 = vector.load %arg4[%c0_22, %c0_23] : memref<8x1xf32, #tpu.memory_space<vmem>>, vector<8x1xf32>
    %26 = vector.broadcast %25 : vector<8x1xf32> to vector<8x128xf32>
    %27 = arith.mulf %24, %26 : vector<8x128xf32>
    %c0_24 = arith.constant 0 : index
    %c0_25 = arith.constant 0 : index
    %28 = vector.load %arg5[%c0_24, %c0_25] : memref<8x1xf32, #tpu.memory_space<vmem>>, vector<8x1xf32>
    %29 = vector.broadcast %28 : vector<8x1xf32> to vector<8x128xf32>
    %30 = arith.addf %27, %29 : vector<8x128xf32>
    %cst_26 = arith.constant 0.000000e+00 : f32
    %31 = vector.broadcast %cst_26 : f32 to vector<8x128xf32>
    %32 = arith.cmpf ogt, %30, %31 : vector<8x128xf32>
    %cst_27 = arith.constant 2.000000e-01 : f32
    %33 = vector.broadcast %cst_27 : f32 to vector<8x128xf32>
    %34 = arith.mulf %33, %30 : vector<8x128xf32>
    %35 = arith.select %32, %30, %34 : vector<8x128xi1>, vector<8x128xf32>
    %c0_28 = arith.constant 0 : index
    %c0_29 = arith.constant 0 : index
    %c0_30 = arith.constant 0 : index
    %36 = vector.load %arg6[%c0_28, %c0_29, %c0_30] : memref<1x8x128xf32, #tpu.memory_space<vmem>>, vector<1x8x128xf32>
    %37 = vector.shape_cast %36 : vector<1x8x128xf32> to vector<8x128xf32>
    %38 = vector.shape_cast %35 : vector<8x128xf32> to vector<1x8x128xf32>
    tpu.vector_store %arg6[%c0_28, %c0_29, %c0_30], %38 {strides = array<i32>} : memref<1x8x128xf32, #tpu.memory_space<vmem>>, vector<1x8x128xf32>,
    return
  }
  func.func @transform_0(%arg0: i32, %arg1: i32) -> (i32, i32, i32) {
    %c0_i32 = arith.constant 0 : i32
    %c0_i32_0 = arith.constant 0 : i32
    %c0_i32_1 = arith.constant 0 : i32
    return %arg0, %c0_i32, %c0_i32_0 : i32, i32, i32
  }
  func.func @transform_1(%arg0: i32, %arg1: i32) -> (i32, i32, i32) {
    %c0_i32 = arith.constant 0 : i32
    %c0_i32_0 = arith.constant 0 : i32
    %c0_i32_1 = arith.constant 0 : i32
    %c0_i32_2 = arith.constant 0 : i32
    return %c0_i32, %c0_i32_0, %c0_i32_1 : i32, i32, i32
  }
  func.func @transform_2(%arg0: i32, %arg1: i32) -> (i32, i32) {
    %c0_i32 = arith.constant 0 : i32
    %c0_i32_0 = arith.constant 0 : i32
    %c0_i32_1 = arith.constant 0 : i32
    return %c0_i32, %c0_i32_0 : i32, i32
  }
  func.func @transform_3(%arg0: i32, %arg1: i32) -> (i32, i32) {
    %c0_i32 = arith.constant 0 : i32
    %c0_i32_0 = arith.constant 0 : i32
    %c0_i32_1 = arith.constant 0 : i32
    return %c0_i32, %c0_i32_0 : i32, i32
  }
  func.func @transform_4(%arg0: i32, %arg1: i32) -> (i32, i32, i32) {
    %c0_i32 = arith.constant 0 : i32
    %c0_i32_0 = arith.constant 0 : i32
    return %arg0, %c0_i32, %arg1 : i32, i32, i32
  }
}

</mosaic_0001>

<llo_original>
// kernel: conv_block_forward.2
$region0: #{conv_block_forward.2}
  #allocation0 [shape = 'u32[]', space=smem, size = 0x4, offset = 0x4, fixed_abs, tag = 'smem constant byte address 0x4 - core index']
  #allocation1 [shape = 'u32[144,128]{1,0:T(1,128)}', space=vmem, size = 0x12000, scoped, tag = 'internal scratch']
  #allocation2 [shape = 'f32[8,128]{1,0:T(8,128)}', space=vmem, size = 0x1000, scoped, tag = 'scratch operand']
  %s0 = inlined_call_operand.vmem [shape: f32[2,4,256], index: 0, kind: input, shape index: {}]
  %s1 = inlined_call_operand.vmem [shape: f32[3,8,4], index: 1, kind: input, shape index: {}]
  %s2 = inlined_call_operand.vmem [shape: f32[2,8,1], index: 2, kind: output, shape index: {0}]
  %s3 = inlined_call_operand.vmem [shape: f32[2,8,1], index: 3, kind: output, shape index: {1}]
  %4 = xla_tuple %s2, %s3
  %s5 = sld [smem:[#allocation0]]
  $region53: #{conv_block_forward.2} parent=0
    _
  %s7 = ssub.s32 1, %s5
  %s8 = scalar_select 0, %s7, %s5
  loop: start=0, step=1, limit=4
  $region2: #{conv_block_forward.2} parent=0 // loop_pre_header
    _
  $region3: #{conv_block_forward.2} parent=0 // loop_header
    %s10 = sphi 0, %s14
    %p11 = scmp.ge.s32.totalorder %s10, 4
    %s17 = sphi 0, %s29
    %s18 = sphi 0, %s25
    %s19 = sphi 0, %s17
    %s20 = sphi 0, %s18
    %s21 = sphi 0, %s19
    %s22 = sphi 0, %s20
    %s32 = sphi 0, %s34
    %s35 = sphi 0, %s32
    %s36 = sphi 0, %s35
    %s52 = sphi 0, %s36
    %s56 = sphi 0, %s56
    %s58 = sphi 0, %s56
    %s59 = sphi 0, %s58
    %s73 = sphi 0, %s59
    %s79 = sphi 0, %s81
    %s82 = sphi 0, %s79
    %s83 = sphi 0, %s82
    %s99 = sphi 0, %s83
    %s105 = sphi 0, %s107
    %s108 = sphi 0, %s105
    %s109 = sphi 0, %s108
    %s125 = sphi 0, %s109
  $region4: #{conv_block_forward.2} parent=0 // loop_header_branch
    %13 = sbr.rel (%p11) target = $region8
  $region5: #{conv_block_forward.2} parent=0 // loop_body
    %s15 = ssub.s32 %s10, 1
    %s16 = ssub.s32 %s10, 2
    %s23 = sadd.s32 1, %s18
    %p24 = scmp.ge.s32.totalorder %s23, 1
    %s25 = scalar_select %p24, 0, %s23
    %s26 = sadd.s32 1, %s17
    %s27 = scalar_select %p24, %s26, %s17
    %p28 = scmp.ge.s32.totalorder %s27, 2
    %s29 = scalar_select %p28, 0, %s27
    %s30 = ssub.s32 %s17, %s29
    %p31 = scmp.eq.s32.totalorder %s30, 0
    %s33 = sadd.s32 %s32, 1
    %s34 = scalar_select %p31, %s32, %s33
    %p37 = pneg %p31
    %p38 = scmp.eq.s32.totalorder %s10, 1
    %p39 = por %p37, %p38
    %p40 = scmp.ne.s32.totalorder %s32, %s35
    %p41 = scmp.eq.s32.totalorder %s10, 0
    %p42 = por %p40, %p41
    %p43 = scmp.ne.s32.totalorder %s32, %s35
    %p44 = scmp.eq.s32.totalorder %s15, 1
    %p45 = por %p43, %p44
    %p46 = scmp.ne.s32.totalorder %s35, %s36
    %p47 = scmp.eq.s32.totalorder %s15, 0
    %p48 = por %p46, %p47
    %p49 = scmp.ne.s32.totalorder %s35, %s36
    %p50 = scmp.eq.s32.totalorder %s16, 1
    %p51 = por %p49, %p50
    %p53 = scmp.ne.s32.totalorder %s36, %s52
    %p54 = scmp.eq.s32.totalorder %s16, 0
    %p55 = por %p53, %p54
    %s57 = sadd.s32 %s56, 1
    %p60 = scmp.eq.s32.totalorder %s10, 1
    %p61 = scmp.ne.s32.totalorder %s56, %s58
    %p62 = scmp.eq.s32.totalorder %s10, 0
    %p63 = por %p61, %p62
    %p64 = scmp.ne.s32.totalorder %s56, %s58
    %p65 = scmp.eq.s32.totalorder %s15, 1
    %p66 = por %p64, %p65
    %p67 = scmp.ne.s32.totalorder %s58, %s59
    %p68 = scmp.eq.s32.totalorder %s15, 0
    %p69 = por %p67, %p68
    %p70 = scmp.ne.s32.totalorder %s58, %s59
    %p71 = scmp.eq.s32.totalorder %s16, 1
    %p72 = por %p70, %p71
    %p74 = scmp.ne.s32.totalorder %s59, %s73
    %p75 = scmp.eq.s32.totalorder %s16, 0
    %p76 = por %p74, %p75
    %s77 = ssub.s32 %s17, %s29
    %p78 = scmp.eq.s32.totalorder %s77, 0
    %s80 = sadd.s32 %s79, 1
    %s81 = scalar_select %p78, %s79, %s80
    %p84 = pneg %p78
    %p85 = scmp.eq.s32.totalorder %s10, 1
    %p86 = por %p84, %p85
    %p87 = scmp.ne.s32.totalorder %s79, %s82
    %p88 = scmp.eq.s32.totalorder %s10, 0
    %p89 = por %p87, %p88
    %p90 = scmp.ne.s32.totalorder %s79, %s82
    %p91 = scmp.eq.s32.totalorder %s15, 1
    %p92 = por %p90, %p91
    %p93 = scmp.ne.s32.totalorder %s82, %s83
    %p94 = scmp.eq.s32.totalorder %s15, 0
    %p95 = por %p93, %p94
    %p96 = scmp.ne.s32.totalorder %s82, %s83
    %p97 = scmp.eq.s32.totalorder %s16, 1
    %p98 = por %p96, %p97
    %p100 = scmp.ne.s32.totalorder %s83, %s99
    %p101 = scmp.eq.s32.totalorder %s16, 0
    %p102 = por %p100, %p101
    %s103 = ssub.s32 %s17, %s29
    %p104 = scmp.eq.s32.totalorder %s103, 0
    %s106 = sadd.s32 %s105, 1
    %s107 = scalar_select %p104, %s105, %s106
    %p110 = pneg %p104
    %p111 = scmp.eq.s32.totalorder %s10, 1
    %p112 = por %p110, %p111
    %p113 = scmp.ne.s32.totalorder %s105, %s108
    %p114 = scmp.eq.s32.totalorder %s10, 0
    %p115 = por %p113, %p114
    %p116 = scmp.ne.s32.totalorder %s105, %s108
    %p117 = scmp.eq.s32.totalorder %s15, 1
    %p118 = por %p116, %p117
    %p119 = scmp.ne.s32.totalorder %s108, %s109
    %p120 = scmp.eq.s32.totalorder %s15, 0
    %p121 = por %p119, %p120
    %p122 = scmp.ne.s32.totalorder %s108, %s109
    %p123 = scmp.eq.s32.totalorder %s16, 1
    %p124 = por %p122, %p123
    %p126 = scmp.ne.s32.totalorder %s109, %s125
    %p127 = scmp.eq.s32.totalorder %s16, 0
    %p128 = por %p126, %p127
    %p129 = scmp.le.s32.totalorder 1, %s10
    %p130 = scmp.lt.s32.totalorder %s10, 3
    %p131 = pnand %p129, %p130
    %p132 = pneg %p131
    // Predicated region
    $region9: #{conv_block_forward.2} parent=5 // pred_check
      _
    $region10: #{conv_block_forward.2} parent=5 // pred_check_branch
      %134 = sbr.rel (%p131) target = $region12
    $region11: #{conv_block_forward.2} parent=5 // pred_region
      %s135 = ssub.s32 %s10, 1
      // Predicated region
      $region13: #{conv_block_forward.2} parent=11 // pred_check
        %p136 = pneg %p69
      $region14: #{conv_block_forward.2} parent=11 // pred_check_branch
        %138 = sbr.rel (%p136) target = $region16
      $region15: #{conv_block_forward.2} parent=11 // pred_region
        _
      $region16: #{conv_block_forward.2} parent=11 // pred_fallthru
        _
    $region12: #{conv_block_forward.2} parent=5 // pred_fallthru
      _
    %p139 = scmp.lt.s32.totalorder %s10, 2
    // Predicated region
    $region17: #{conv_block_forward.2} parent=5 // pred_check
      %p140 = pneg %p139
    $region18: #{conv_block_forward.2} parent=5 // pred_check_branch
      %142 = sbr.rel (%p140) target = $region20
    $region19: #{conv_block_forward.2} parent=5 // pred_region
      // Predicated region
      $region21: #{conv_block_forward.2} parent=19 // pred_check
        %p143 = pneg %p42
      $region22: #{conv_block_forward.2} parent=19 // pred_check_branch
        %145 = sbr.rel (%p143) target = $region24
      $region23: #{conv_block_forward.2} parent=19 // pred_region
        %p146 = scmp.lt.s32.totalorder %s17, 1
        %s147 = scalar_select %p146, %s17, 1
        %s148 = smul.addr %s147, 2
        %s149 = smul.addr %s148, 4
        %s150 = scalar_lea.vmem %s0, %s149
      $region24: #{conv_block_forward.2} parent=19 // pred_fallthru
        _
    $region20: #{conv_block_forward.2} parent=5 // pred_fallthru
      _
    %p151 = scmp.le.s32.totalorder 1, %s10
    %p152 = scmp.lt.s32.totalorder %s10, 3
    %p153 = pnand %p151, %p152
    %p154 = pneg %p153
    // Predicated region
    $region25: #{conv_block_forward.2} parent=5 // pred_check
      _
    $region26: #{conv_block_forward.2} parent=5 // pred_check_branch
      %156 = sbr.rel (%p153) target = $region28
    $region27: #{conv_block_forward.2} parent=5 // pred_region
      %s157 = ssub.s32 %s10, 1
      %p158 = scmp.lt.s32.totalorder %s19, 1
      %s159 = scalar_select %p158, %s19, 1
      %s160 = smul.addr %s159, 2
      %s161 = smul.addr %s160, 4
      %s162 = scalar_lea.vmem %s0, %s161
      %p163 = pneg %p48
      %p164 = pneg %p45
      %p165 = pneg %p69
      %p166 = pneg %p66
      %p167 = pneg %p95
      %p168 = pneg %p92
      %p169 = scmp.lt.s32.totalorder %s19, 1
      %s170 = scalar_select %p169, %s19, 1
      %s171 = smul.addr %s170, 8
      %s172 = scalar_lea.vmem %s2, %s171
      %p173 = pneg %p121
      %p174 = pneg %p118
      %p175 = scmp.lt.s32.totalorder %s19, 1
      %s176 = scalar_select %p175, %s19, 1
      %s177 = smul.addr %s176, 8
      %s178 = scalar_lea.vmem %s3, %s177
      %p179 = scmp.lt.s32.totalorder %s19, 1
      %s180 = scalar_select %p179, %s19, 1
      %s181 = smul.addr %s180, 2
      %s182 = smul.addr %s181, 4
      %s183 = scalar_lea.vmem %s0, %s182
      %p184 = scmp.lt.s32.totalorder %s19, 1
      %s185 = scalar_select %p184, %s19, 1
      %s186 = smul.addr %s185, 8
      %s187 = scalar_lea.vmem %s2, %s186
      %p188 = scmp.lt.s32.totalorder %s19, 1
      %s189 = scalar_select %p188, %s19, 1
      %s190 = smul.addr %s189, 8
      %s191 = scalar_lea.vmem %s3, %s190
      %p192 = scmp.eq.s32.totalorder %s20, 0
      // Predicated region
      $region29: #{conv_block_forward.2} parent=27 // pred_check
        %p193 = pneg %p192
      $region30: #{conv_block_forward.2} parent=27 // pred_check_branch
        %195 = sbr.rel (%p193) target = $region32
      $region31: #{conv_block_forward.2} parent=27 // pred_region
        %vm196 = vcmask 7168
        %197 = vst.msk [vmem:[%s187] sm:$0xff] %vm196, 0.0
        %198 = vst.msk [vmem:[%s191] sm:$0xff] %vm196, 0.0
      $region32: #{conv_block_forward.2} parent=27 // pred_fallthru
        _
      %s199 = smul.u32 %s20, 128
      %s200 = sshra.s32 %s199, 7
      %s201 = sand.u32 %s199, 127
      %s202 = smul.addr %s200, 4
      %s203 = scalar_lea.vmem %s183, %s202
      %v204 = vld [vmem:[%s203] sm:$0xff]
      %v205 = vld [vmem:[%s1] sm:$0xff]
      %vm206 = vcmask 31744
      %v208 = vsel %vm206, %v205, 0
      %vm210 = vcmask 1043456
      %v212 = vsel %vm210, %v204, 0
      %214 = vmatprep.subr.mxu0 0.0
      %215 = vmatpush1.msra.mxu0 %v212
      %216 = vmatprep.subr.mxu0 0.0
      %217 = vmatpush1.msra.mxu0 0.0
      %218 = vmatprep.subr.mxu0 0.0
      %219 = vmatpush1.msra.mxu0 0.0
      %220 = vmatprep.subr.mxu0 0.0
      %221 = vmatpush1.msra.mxu0 0.0
      %222 = vmatprep.subr.mxu0 0.0
      %223 = vmatpush1.msra.mxu0 0.0
      %224 = vmatprep.subr.mxu0 0.0
      %225 = vmatpush1.msra.mxu0 0.0
      %226 = vmatprep.subr.mxu0 0.0
      %227 = vmatpush1.msra.mxu0 0.0
      %228 = vmatprep.subr.mxu0 0.0
      %229 = vmatpush1.msra.mxu0 0.0
      %230 = vmatprep.subr.mxu0 0.0
      %231 = vmatpush1.msra.mxu0 0.0
      %232 = vmatprep.subr.mxu0 0.0
      %233 = vmatpush1.msra.mxu0 0.0
      %234 = vmatprep.subr.mxu0 0.0
      %235 = vmatpush1.msra.mxu0 0.0
      %236 = vmatprep.subr.mxu0 0.0
      %237 = vmatpush1.msra.mxu0 0.0
      %238 = vmatprep.subr.mxu0 0.0
      %239 = vmatpush1.msra.mxu0 0.0
      %240 = vmatprep.subr.mxu0 0.0
      %241 = vmatpush1.msra.mxu0 0.0
      %242 = vmatprep.subr.mxu0 0.0
      %243 = vmatpush1.msra.mxu0 0.0
      %244 = vmatprep.subr.mxu0 0.0
      %245 = vmatpush1.msra.mxu0 0.0
      %246 = vmatprep.subr.mxu0 0.0
      %247 = vmatpush1.msra.mxu0 0.0
      %248 = vmatprep.subr.mxu0 0.0
      %249 = vmatpush1.msra.mxu0 0.0
      %250 = vmatprep.subr.mxu0 0.0
      %251 = vmatpush1.msra.mxu0 0.0
      %252 = vmatprep.subr.mxu0 0.0
      %253 = vmatpush1.msra.mxu0 0.0
      %254 = vmatprep.subr.mxu0 0.0
      %255 = vmatpush1.msra.mxu0 0.0
      %256 = vmatprep.subr.mxu0 0.0
      %257 = vmatpush1.msra.mxu0 0.0
      %258 = vmatprep.subr.mxu0 0.0
      %259 = vmatpush1.msra.mxu0 0.0
      %260 = vmatprep.subr.mxu0 0.0
      %261 = vmatpush1.msra.mxu0 0.0
      %262 = vmatprep.subr.mxu0 0.0
      %263 = vmatpush1.msra.mxu0 0.0
      %264 = vmatprep.subr.mxu0 0.0
      %265 = vmatpush1.msra.mxu0 0.0
      %266 = vmatprep.subr.mxu0 0.0
      %267 = vmatpush1.msra.mxu0 0.0
      %268 = vmatprep.subr.mxu0 0.0
      %269 = vmatpush1.msra.mxu0 0.0
      %270 = vmatprep.subr.mxu0 0.0
      %271 = vmatpush1.msra.mxu0 0.0
      %272 = vmatprep.subr.mxu0 0.0
      %273 = vmatpush1.msra.mxu0 0.0
      %274 = vmatprep.subr.mxu0 0.0
      %275 = vmatpush1.msra.mxu0 0.0
      %276 = vmatprep.subr.mxu0 0.0
      %277 = vmatpush1.msra.mxu0 0.0
      %278 = vmatprep.mubr.f32.mxu0 0.0
      %279 = vmatmul.mubr.f32.gmra.mrb[0].mxu0 %v208
      %v280 = vpop.f32.mrb[0].mxu0
      %v281 = vadd.f32 0.0, %v280
      %v282 = vpop.f32.mrb[0].mxu0
      %283 = vdwg.mxu0
      %284 = vst [vmem:[#allocation2] sm:$0xff] %v281
      %v285 = vld [vmem:[#allocation2] sm:$0xff]
      %s286 = scalar_lea.vmem %s1, 8
      %v287 = vld [vmem:[%s286] sm:$0xff]
      %v288 = vcombine.high %v204, %v204
      %289 = vrot.lane.b32.xlu0 %v204, 127
      %v290 = vpop.permute.xlu0 %289
      %291 = vrot.lane.b32.xlu0 %v288, 127
      %v292 = vpop.permute.xlu0 %291
      %vm293 = vcmask 1039360
      %v294 = vsel %vm293, %v290, %v292
      %v296 = vsel %vm206, %v287, 0
      %v298 = vsel %vm210, %v294, 0
      %300 = vmatprep.subr.mxu0 0.0
      %301 = vmatpush1.msra.mxu0 %v298
      %302 = vmatprep.subr.mxu0 0.0
      %303 = vmatpush1.msra.mxu0 0.0
      %304 = vmatprep.subr.mxu0 0.0
      %305 = vmatpush1.msra.mxu0 0.0
      %306 = vmatprep.subr.mxu0 0.0
      %307 = vmatpush1.msra.mxu0 0.0
      %308 = vmatprep.subr.mxu0 0.0
      %309 = vmatpush1.msra.mxu0 0.0
      %310 = vmatprep.subr.mxu0 0.0
      %311 = vmatpush1.msra.mxu0 0.0
      %312 = vmatprep.subr.mxu0 0.0
      %313 = vmatpush1.msra.mxu0 0.0
      %314 = vmatprep.subr.mxu0 0.0
      %315 = vmatpush1.msra.mxu0 0.0
      %316 = vmatprep.subr.mxu0 0.0
      %317 = vmatpush1.msra.mxu0 0.0
      %318 = vmatprep.subr.mxu0 0.0
      %319 = vmatpush1.msra.mxu0 0.0
      %320 = vmatprep.subr.mxu0 0.0
      %321 = vmatpush1.msra.mxu0 0.0
      %322 = vmatprep.subr.mxu0 0.0
      %323 = vmatpush1.msra.mxu0 0.0
      %324 = vmatprep.subr.mxu0 0.0
      %325 = vmatpush1.msra.mxu0 0.0
      %326 = vmatprep.subr.mxu0 0.0
      %327 = vmatpush1.msra.mxu0 0.0
      %328 = vmatprep.subr.mxu0 0.0
      %329 = vmatpush1.msra.mxu0 0.0
      %330 = vmatprep.subr.mxu0 0.0
      %331 = vmatpush1.msra.mxu0 0.0
      %332 = vmatprep.subr.mxu0 0.0
      %333 = vmatpush1.msra.mxu0 0.0
      %334 = vmatprep.subr.mxu0 0.0
      %335 = vmatpush1.msra.mxu0 0.0
      %336 = vmatprep.subr.mxu0 0.0
      %337 = vmatpush1.msra.mxu0 0.0
      %338 = vmatprep.subr.mxu0 0.0
      %339 = vmatpush1.msra.mxu0 0.0
      %340 = vmatprep.subr.mxu0 0.0
      %341 = vmatpush1.msra.mxu0 0.0
      %342 = vmatprep.subr.mxu0 0.0
      %343 = vmatpush1.msra.mxu0 0.0
      %344 = vmatprep.subr.mxu0 0.0
      %345 = vmatpush1.msra.mxu0 0.0
      %346 = vmatprep.subr.mxu0 0.0
      %347 = vmatpush1.msra.mxu0 0.0
      %348 = vmatprep.subr.mxu0 0.0
      %349 = vmatpush1.msra.mxu0 0.0
      %350 = vmatprep.subr.mxu0 0.0
      %351 = vmatpush1.msra.mxu0 0.0
      %352 = vmatprep.subr.mxu0 0.0
      %353 = vmatpush1.msra.mxu0 0.0
      %354 = vmatprep.subr.mxu0 0.0
      %355 = vmatpush1.msra.mxu0 0.0
      %356 = vmatprep.subr.mxu0 0.0
      %357 = vmatpush1.msra.mxu0 0.0
      %358 = vmatprep.subr.mxu0 0.0
      %359 = vmatpush1.msra.mxu0 0.0
      %360 = vmatprep.subr.mxu0 0.0
      %361 = vmatpush1.msra.mxu0 0.0
      %362 = vmatprep.subr.mxu0 0.0
      %363 = vmatpush1.msra.mxu0 0.0
      %364 = vmatprep.mubr.f32.mxu0 0.0
      %365 = vmatmul.mubr.f32.gmra.mrb[0].mxu0 %v296
      %v366 = vpop.f32.mrb[0].mxu0
      %v367 = vadd.f32 0.0, %v366
      %v368 = vpop.f32.mrb[0].mxu0
      %369 = vdwg.mxu0
      %v370 = vadd.f32 %v285, %v367
      %371 = vst [vmem:[#allocation2] sm:$0xff] %v370
      %v372 = vld [vmem:[#allocation2] sm:$0xff]
      %s373 = scalar_lea.vmem %s1, 16
      %v374 = vld [vmem:[%s373] sm:$0xff]
      %375 = vrot.lane.b32.xlu0 %v204, 126
      %v376 = vpop.permute.xlu0 %375
      %377 = vrot.lane.b32.xlu0 %v288, 126
      %v378 = vpop.permute.xlu0 %377
      %vm379 = vcmask 1031168
      %v380 = vsel %vm379, %v376, %v378
      %v382 = vsel %vm206, %v374, 0
      %v384 = vsel %vm210, %v380, 0
      %386 = vmatprep.subr.mxu0 0.0
      %387 = vmatpush1.msra.mxu0 %v384
      %388 = vmatprep.subr.mxu0 0.0
      %389 = vmatpush1.msra.mxu0 0.0
      %390 = vmatprep.subr.mxu0 0.0
      %391 = vmatpush1.msra.mxu0 0.0
      %392 = vmatprep.subr.mxu0 0.0
      %393 = vmatpush1.msra.mxu0 0.0
      %394 = vmatprep.subr.mxu0 0.0
      %395 = vmatpush1.msra.mxu0 0.0
      %396 = vmatprep.subr.mxu0 0.0
      %397 = vmatpush1.msra.mxu0 0.0
      %398 = vmatprep.subr.mxu0 0.0
      %399 = vmatpush1.msra.mxu0 0.0
      %400 = vmatprep.subr.mxu0 0.0
      %401 = vmatpush1.msra.mxu0 0.0
      %402 = vmatprep.subr.mxu0 0.0
      %403 = vmatpush1.msra.mxu0 0.0
      %404 = vmatprep.subr.mxu0 0.0
      %405 = vmatpush1.msra.mxu0 0.0
      %406 = vmatprep.subr.mxu0 0.0
      %407 = vmatpush1.msra.mxu0 0.0
      %408 = vmatprep.subr.mxu0 0.0
      %409 = vmatpush1.msra.mxu0 0.0
      %410 = vmatprep.subr.mxu0 0.0
      %411 = vmatpush1.msra.mxu0 0.0
      %412 = vmatprep.subr.mxu0 0.0
      %413 = vmatpush1.msra.mxu0 0.0
      %414 = vmatprep.subr.mxu0 0.0
      %415 = vmatpush1.msra.mxu0 0.0
      %416 = vmatprep.subr.mxu0 0.0
      %417 = vmatpush1.msra.mxu0 0.0
      %418 = vmatprep.subr.mxu0 0.0
      %419 = vmatpush1.msra.mxu0 0.0
      %420 = vmatprep.subr.mxu0 0.0
      %421 = vmatpush1.msra.mxu0 0.0
      %422 = vmatprep.subr.mxu0 0.0
      %423 = vmatpush1.msra.mxu0 0.0
      %424 = vmatprep.subr.mxu0 0.0
      %425 = vmatpush1.msra.mxu0 0.0
      %426 = vmatprep.subr.mxu0 0.0
      %427 = vmatpush1.msra.mxu0 0.0
      %428 = vmatprep.subr.mxu0 0.0
      %429 = vmatpush1.msra.mxu0 0.0
      %430 = vmatprep.subr.mxu0 0.0
      %431 = vmatpush1.msra.mxu0 0.0
      %432 = vmatprep.subr.mxu0 0.0
      %433 = vmatpush1.msra.mxu0 0.0
      %434 = vmatprep.subr.mxu0 0.0
      %435 = vmatpush1.msra.mxu0 0.0
      %436 = vmatprep.subr.mxu0 0.0
      %437 = vmatpush1.msra.mxu0 0.0
      %438 = vmatprep.subr.mxu0 0.0
      %439 = vmatpush1.msra.mxu0 0.0
      %440 = vmatprep.subr.mxu0 0.0
      %441 = vmatpush1.msra.mxu0 0.0
      %442 = vmatprep.subr.mxu0 0.0
      %443 = vmatpush1.msra.mxu0 0.0
      %444 = vmatprep.subr.mxu0 0.0
      %445 = vmatpush1.msra.mxu0 0.0
      %446 = vmatprep.subr.mxu0 0.0
      %447 = vmatpush1.msra.mxu0 0.0
      %448 = vmatprep.subr.mxu0 0.0
      %449 = vmatpush1.msra.mxu0 0.0
      %450 = vmatprep.mubr.f32.mxu0 0.0
      %451 = vmatmul.mubr.f32.gmra.mrb[0].mxu0 %v382
      %v452 = vpop.f32.mrb[0].mxu0
      %v453 = vadd.f32 0.0, %v452
      %v454 = vpop.f32.mrb[0].mxu0
      %455 = vdwg.mxu0
      %v456 = vadd.f32 %v372, %v453
      %457 = vst [vmem:[#allocation2] sm:$0xff] %v456
      %v458 = vld [vmem:[#allocation2] sm:$0xff]
      %v459 = vlaneseq
      %v460 = vand.u32 %v459, 127
      %v461 = vstv %s199
      %v462 = vadd.s32 %v460, %v461
      %vm463 = vcmp.lt.s32.totalorder %v462, 16
      %v464 = vsel %vm463, 1, 0
      %vm465 = vcmp.eq.s32.totalorder %v464, 1
      %v466 = vsel %vm465, %v458, 0.0
      %v467 = vld [vmem:[%s187] sm:$0xff]
      %468 = vadd.xlane.f32.xlu0 %v466
      %v469 = vpop.xlane.xlu0 %468
      %v470 = vadd.f32 %v467, %v469
      %vm471 = vcmask 7168
      %472 = vst.msk [vmem:[%s187] sm:$0xff] %vm471, %v470
      %v473 = vld [vmem:[%s191] sm:$0xff]
      %v474 = vmul.f32 %v466, %v458
      %475 = vadd.xlane.f32.xlu0 %v474
      %v476 = vpop.xlane.xlu0 %475
      %v477 = vadd.f32 %v473, %v476
      %478 = vst.msk [vmem:[%s191] sm:$0xff] %vm471, %v477
      %p479 = scmp.lt.s32.totalorder %s19, 1
      %s480 = scalar_select %p479, %s19, 1
      %s481 = smul.addr %s480, 8
      %s482 = scalar_lea.vmem %s2, %s481
      %p483 = scmp.lt.s32.totalorder %s19, 1
      %s484 = scalar_select %p483, %s19, 1
      %s485 = smul.addr %s484, 8
      %s486 = scalar_lea.vmem %s3, %s485
      // Predicated region
      $region33: #{conv_block_forward.2} parent=27 // pred_check
        %p487 = pneg %p92
      $region34: #{conv_block_forward.2} parent=27 // pred_check_branch
        %489 = sbr.rel (%p487) target = $region36
      $region35: #{conv_block_forward.2} parent=27 // pred_region
        _
      $region36: #{conv_block_forward.2} parent=27 // pred_fallthru
        _
      // Predicated region
      $region37: #{conv_block_forward.2} parent=27 // pred_check
        %p490 = pneg %p118
      $region38: #{conv_block_forward.2} parent=27 // pred_check_branch
        %492 = sbr.rel (%p490) target = $region40
      $region39: #{conv_block_forward.2} parent=27 // pred_region
        _
      $region40: #{conv_block_forward.2} parent=27 // pred_fallthru
        _
    $region28: #{conv_block_forward.2} parent=5 // pred_fallthru
      _
    %p493 = scmp.le.s32.totalorder 2, %s10
    // Predicated region
    $region41: #{conv_block_forward.2} parent=5 // pred_check
      %p494 = pneg %p493
    $region42: #{conv_block_forward.2} parent=5 // pred_check_branch
      %496 = sbr.rel (%p494) target = $region44
    $region43: #{conv_block_forward.2} parent=5 // pred_region
      %s497 = ssub.s32 %s10, 2
      // Predicated region
      $region45: #{conv_block_forward.2} parent=43 // pred_check
        %p498 = pneg %p98
      $region46: #{conv_block_forward.2} parent=43 // pred_check_branch
        %500 = sbr.rel (%p498) target = $region48
      $region47: #{conv_block_forward.2} parent=43 // pred_region
        %p501 = scmp.lt.s32.totalorder %s21, 1
        %s502 = scalar_select %p501, %s21, 1
        %s503 = smul.addr %s502, 8
        %s504 = scalar_lea.vmem %s2, %s503
      $region48: #{conv_block_forward.2} parent=43 // pred_fallthru
        _
      // Predicated region
      $region49: #{conv_block_forward.2} parent=43 // pred_check
        %p505 = pneg %p124
      $region50: #{conv_block_forward.2} parent=43 // pred_check_branch
        %507 = sbr.rel (%p505) target = $region52
      $region51: #{conv_block_forward.2} parent=43 // pred_region
        %p508 = scmp.lt.s32.totalorder %s21, 1
        %s509 = scalar_select %p508, %s21, 1
        %s510 = smul.addr %s509, 8
        %s511 = scalar_lea.vmem %s3, %s510
      $region52: #{conv_block_forward.2} parent=43 // pred_fallthru
        _
    $region44: #{conv_block_forward.2} parent=5 // pred_fallthru
      _
  $region6: #{conv_block_forward.2} parent=0 // loop_footer
    %s14 = sadd.s32 1, %s10
  $region7: #{conv_block_forward.2} parent=0 // loop_footer_branch
    %9 = sbr.rel target = $region3
  $region8: #{conv_block_forward.2} parent=0 // loop_exit
    _

// kernel: conv_block_forward.3
$region0: #{conv_block_forward.3}
  #allocation0 [shape = 'u32[]', space=smem, size = 0x4, offset = 0x4, fixed_abs, tag = 'smem constant byte address 0x4 - core index']
  #allocation1 [shape = 'u32[144,128]{1,0:T(1,128)}', space=vmem, size = 0x12000, scoped, tag = 'internal scratch']
  #allocation2 [shape = 'f32[8,128]{1,0:T(8,128)}', space=vmem, size = 0x1000, scoped, tag = 'scratch operand']
  %s0 = inlined_call_operand.vmem [shape: f32[2,4,256], index: 0, kind: input, shape index: {}]
  %s1 = inlined_call_operand.vmem [shape: f32[3,8,4], index: 1, kind: input, shape index: {}]
  %s2 = inlined_call_operand.vmem [shape: f32[8,1], index: 2, kind: input, shape index: {}]
  %s3 = inlined_call_operand.vmem [shape: f32[8,1], index: 3, kind: input, shape index: {}]
  %s4 = inlined_call_operand.hbm [shape: f32[2,8,128], index: 4, kind: output, shape index: {}]
  %s5 = sld [smem:[#allocation0]]
  $region49: #{conv_block_forward.3} parent=0
    _
  %s7 = ssub.s32 1, %s5
  %s8 = scalar_select 0, %s7, %s5
  $region1: #{conv_block_forward.3} parent=0
    #allocation3 [shape = 'u8[8192]{0}', space=vmem, size = 0x2000, scoped, tag = 'output window, operand 0']
    #allocation4 [shape = 's32[2]{0}', space=sflag, size = 0x8, scoped, tag = 'scoped memory for conv_block_forward.3']
    %9 = vsyncpa [#allocation4], 0
    %s10 = scalar_lea.sflag [#allocation4], 1
    %11 = vsyncpa %s10, 0
    loop: start=0, step=1, limit=4
    $region2: #{conv_block_forward.3} parent=1 // loop_pre_header
      _
    $region3: #{conv_block_forward.3} parent=1 // loop_header
      %s13 = sphi 0, %s17
      %p14 = scmp.ge.s32.totalorder %s13, 4
      %s20 = sphi 0, %s32
      %s21 = sphi 0, %s28
      %s22 = sphi 0, %s20
      %s23 = sphi 0, %s21
      %s24 = sphi 0, %s22
      %s25 = sphi 0, %s23
      %s35 = sphi 0, %s37
      %s38 = sphi 0, %s35
      %s39 = sphi 0, %s38
      %s55 = sphi 0, %s39
      %s59 = sphi 0, %s59
      %s61 = sphi 0, %s59
      %s62 = sphi 0, %s61
      %s76 = sphi 0, %s62
      %s80 = sphi 0, %s80
      %s82 = sphi 0, %s80
      %s83 = sphi 0, %s82
      %s97 = sphi 0, %s83
      %s101 = sphi 0, %s101
      %s103 = sphi 0, %s101
      %s104 = sphi 0, %s103
      %s118 = sphi 0, %s104
      %s126 = sphi 0, %s128
      %s129 = sphi 0, %s126
      %s130 = sphi 0, %s129
      %s146 = sphi 0, %s130
    $region4: #{conv_block_forward.3} parent=1 // loop_header_branch
      %16 = sbr.rel (%p14) target = $region8
    $region5: #{conv_block_forward.3} parent=1 // loop_body
      %s18 = ssub.s32 %s13, 1
      %s19 = ssub.s32 %s13, 2
      %s26 = sadd.s32 1, %s21
      %p27 = scmp.ge.s32.totalorder %s26, 1
      %s28 = scalar_select %p27, 0, %s26
      %s29 = sadd.s32 1, %s20
      %s30 = scalar_select %p27, %s29, %s20
      %p31 = scmp.ge.s32.totalorder %s30, 2
      %s32 = scalar_select %p31, 0, %s30
      %s33 = ssub.s32 %s20, %s32
      %p34 = scmp.eq.s32.totalorder %s33, 0
      %s36 = sadd.s32 %s35, 1
      %s37 = scalar_select %p34, %s35, %s36
      %p40 = pneg %p34
      %p41 = scmp.eq.s32.totalorder %s13, 1
      %p42 = por %p40, %p41
      %p43 = scmp.ne.s32.totalorder %s35, %s38
      %p44 = scmp.eq.s32.totalorder %s13, 0
      %p45 = por %p43, %p44
      %p46 = scmp.ne.s32.totalorder %s35, %s38
      %p47 = scmp.eq.s32.totalorder %s18, 1
      %p48 = por %p46, %p47
      %p49 = scmp.ne.s32.totalorder %s38, %s39
      %p50 = scmp.eq.s32.totalorder %s18, 0
      %p51 = por %p49, %p50
      %p52 = scmp.ne.s32.totalorder %s38, %s39
      %p53 = scmp.eq.s32.totalorder %s19, 1
      %p54 = por %p52, %p53
      %p56 = scmp.ne.s32.totalorder %s39, %s55
      %p57 = scmp.eq.s32.totalorder %s19, 0
      %p58 = por %p56, %p57
      %s60 = sadd.s32 %s59, 1
      %p63 = scmp.eq.s32.totalorder %s13, 1
      %p64 = scmp.ne.s32.totalorder %s59, %s61
      %p65 = scmp.eq.s32.totalorder %s13, 0
      %p66 = por %p64, %p65
      %p67 = scmp.ne.s32.totalorder %s59, %s61
      %p68 = scmp.eq.s32.totalorder %s18, 1
      %p69 = por %p67, %p68
      %p70 = scmp.ne.s32.totalorder %s61, %s62
      %p71 = scmp.eq.s32.totalorder %s18, 0
      %p72 = por %p70, %p71
      %p73 = scmp.ne.s32.totalorder %s61, %s62
      %p74 = scmp.eq.s32.totalorder %s19, 1
      %p75 = por %p73, %p74
      %p77 = scmp.ne.s32.totalorder %s62, %s76
      %p78 = scmp.eq.s32.totalorder %s19, 0
      %p79 = por %p77, %p78
      %s81 = sadd.s32 %s80, 1
      %p84 = scmp.eq.s32.totalorder %s13, 1
      %p85 = scmp.ne.s32.totalorder %s80, %s82
      %p86 = scmp.eq.s32.totalorder %s13, 0
      %p87 = por %p85, %p86
      %p88 = scmp.ne.s32.totalorder %s80, %s82
      %p89 = scmp.eq.s32.totalorder %s18, 1
      %p90 = por %p88, %p89
      %p91 = scmp.ne.s32.totalorder %s82, %s83
      %p92 = scmp.eq.s32.totalorder %s18, 0
      %p93 = por %p91, %p92
      %p94 = scmp.ne.s32.totalorder %s82, %s83
      %p95 = scmp.eq.s32.totalorder %s19, 1
      %p96 = por %p94, %p95
      %p98 = scmp.ne.s32.totalorder %s83, %s97
      %p99 = scmp.eq.s32.totalorder %s19, 0
      %p100 = por %p98, %p99
      %s102 = sadd.s32 %s101, 1
      %p105 = scmp.eq.s32.totalorder %s13, 1
      %p106 = scmp.ne.s32.totalorder %s101, %s103
      %p107 = scmp.eq.s32.totalorder %s13, 0
      %p108 = por %p106, %p107
      %p109 = scmp.ne.s32.totalorder %s101, %s103
      %p110 = scmp.eq.s32.totalorder %s18, 1
      %p111 = por %p109, %p110
      %p112 = scmp.ne.s32.totalorder %s103, %s104
      %p113 = scmp.eq.s32.totalorder %s18, 0
      %p114 = por %p112, %p113
      %p115 = scmp.ne.s32.totalorder %s103, %s104
      %p116 = scmp.eq.s32.totalorder %s19, 1
      %p117 = por %p115, %p116
      %p119 = scmp.ne.s32.totalorder %s104, %s118
      %p120 = scmp.eq.s32.totalorder %s19, 0
      %p121 = por %p119, %p120
      %s122 = ssub.s32 %s20, %s32
      %s123 = ssub.s32 %s21, %s28
      %s124 = sor.u32 %s122, %s123
      %p125 = scmp.eq.s32.totalorder %s124, 0
      %s127 = sadd.s32 %s126, 1
      %s128 = scalar_select %p125, %s126, %s127
      %p131 = pneg %p125
      %p132 = scmp.eq.s32.totalorder %s13, 1
      %p133 = por %p131, %p132
      %p134 = scmp.ne.s32.totalorder %s126, %s129
      %p135 = scmp.eq.s32.totalorder %s13, 0
      %p136 = por %p134, %p135
      %p137 = scmp.ne.s32.totalorder %s126, %s129
      %p138 = scmp.eq.s32.totalorder %s18, 1
      %p139 = por %p137, %p138
      %p140 = scmp.ne.s32.totalorder %s129, %s130
      %p141 = scmp.eq.s32.totalorder %s18, 0
      %p142 = por %p140, %p141
      %p143 = scmp.ne.s32.totalorder %s129, %s130
      %p144 = scmp.eq.s32.totalorder %s19, 1
      %p145 = por %p143, %p144
      %p147 = scmp.ne.s32.totalorder %s130, %s146
      %p148 = scmp.eq.s32.totalorder %s19, 0
      %p149 = por %p147, %p148
      %p150 = scmp.le.s32.totalorder 1, %s13
      %p151 = scmp.lt.s32.totalorder %s13, 3
      %p152 = pnand %p150, %p151
      %p153 = pneg %p152
      // Predicated region
      $region9: #{conv_block_forward.3} parent=5 // pred_check
        _
      $region10: #{conv_block_forward.3} parent=5 // pred_check_branch
        %155 = sbr.rel (%p152) target = $region12
      $region11: #{conv_block_forward.3} parent=5 // pred_region
        %s156 = ssub.s32 %s13, 1
        // Predicated region
        $region13: #{conv_block_forward.3} parent=11 // pred_check
          %p157 = pneg %p72
        $region14: #{conv_block_forward.3} parent=11 // pred_check_branch
          %159 = sbr.rel (%p157) target = $region16
        $region15: #{conv_block_forward.3} parent=11 // pred_region
          _
        $region16: #{conv_block_forward.3} parent=11 // pred_fallthru
          _
        // Predicated region
        $region17: #{conv_block_forward.3} parent=11 // pred_check
          %p160 = pneg %p93
        $region18: #{conv_block_forward.3} parent=11 // pred_check_branch
          %162 = sbr.rel (%p160) target = $region20
        $region19: #{conv_block_forward.3} parent=11 // pred_region
          _
        $region20: #{conv_block_forward.3} parent=11 // pred_fallthru
          _
        // Predicated region
        $region21: #{conv_block_forward.3} parent=11 // pred_check
          %p163 = pneg %p114
        $region22: #{conv_block_forward.3} parent=11 // pred_check_branch
          %165 = sbr.rel (%p163) target = $region24
        $region23: #{conv_block_forward.3} parent=11 // pred_region
          _
        $region24: #{conv_block_forward.3} parent=11 // pred_fallthru
          _
      $region12: #{conv_block_forward.3} parent=5 // pred_fallthru
        _
      %p166 = scmp.lt.s32.totalorder %s13, 2
      // Predicated region
      $region25: #{conv_block_forward.3} parent=5 // pred_check
        %p167 = pneg %p166
      $region26: #{conv_block_forward.3} parent=5 // pred_check_branch
        %169 = sbr.rel (%p167) target = $region28
      $region27: #{conv_block_forward.3} parent=5 // pred_region
        // Predicated region
        $region29: #{conv_block_forward.3} parent=27 // pred_check
          %p170 = pneg %p45
        $region30: #{conv_block_forward.3} parent=27 // pred_check_branch
          %172 = sbr.rel (%p170) target = $region32
        $region31: #{conv_block_forward.3} parent=27 // pred_region
          %p173 = scmp.lt.s32.totalorder %s20, 1
          %s174 = scalar_select %p173, %s20, 1
          %s175 = smul.addr %s174, 2
          %s176 = smul.addr %s175, 4
          %s177 = scalar_lea.vmem %s0, %s176
        $region32: #{conv_block_forward.3} parent=27 // pred_fallthru
          _
      $region28: #{conv_block_forward.3} parent=5 // pred_fallthru
        _
      %p178 = scmp.le.s32.totalorder 1, %s13
      %p179 = scmp.lt.s32.totalorder %s13, 3
      %p180 = pnand %p178, %p179
      %p181 = pneg %p180
      // Predicated region
      $region33: #{conv_block_forward.3} parent=5 // pred_check
        _
      $region34: #{conv_block_forward.3} parent=5 // pred_check_branch
        %183 = sbr.rel (%p180) target = $region36
      $region35: #{conv_block_forward.3} parent=5 // pred_region
        %s184 = ssub.s32 %s13, 1
        %p185 = scmp.lt.s32.totalorder %s22, 1
        %s186 = scalar_select %p185, %s22, 1
        %s187 = smul.addr %s186, 2
        %s188 = smul.addr %s187, 4
        %s189 = scalar_lea.vmem %s0, %s188
        %p190 = pneg %p51
        %p191 = pneg %p48
        %p192 = pneg %p72
        %p193 = pneg %p69
        %p194 = pneg %p93
        %p195 = pneg %p90
        %p196 = pneg %p114
        %p197 = pneg %p111
        %p198 = pneg %p142
        %p199 = pneg %p139
        %s200 = sand.u32 %s129, 1
        %s201 = scalar_lea.sflag [#allocation4], %s200
        %s202 = sand.u32 %s129, 1
        %s203 = smul.addr %s202, 8
        %s204 = scalar_lea.vmem [#allocation3], %s203
        %p205 = scmp.lt.s32.totalorder %s22, 1
        %s206 = scalar_select %p205, %s22, 1
        %s207 = smul.addr %s206, 2
        %s208 = smul.addr %s207, 4
        %s209 = scalar_lea.vmem %s0, %s208
        %s210 = smul.u32 %s23, 128
        %s211 = sshra.s32 %s210, 7
        %s212 = sand.u32 %s210, 127
        %s213 = smul.addr %s211, 4
        %s214 = scalar_lea.vmem %s209, %s213
        %v215 = vld [vmem:[%s214] sm:$0xff]
        %v216 = vld [vmem:[%s1] sm:$0xff]
        %vm217 = vcmask 31744
        %v219 = vsel %vm217, %v216, 0
        %vm221 = vcmask 1043456
        %v223 = vsel %vm221, %v215, 0
        %225 = vmatprep.subr.mxu0 0.0
        %226 = vmatpush1.msra.mxu0 %v223
        %227 = vmatprep.subr.mxu0 0.0
        %228 = vmatpush1.msra.mxu0 0.0
        %229 = vmatprep.subr.mxu0 0.0
        %230 = vmatpush1.msra.mxu0 0.0
        %231 = vmatprep.subr.mxu0 0.0
        %232 = vmatpush1.msra.mxu0 0.0
        %233 = vmatprep.subr.mxu0 0.0
        %234 = vmatpush1.msra.mxu0 0.0
        %235 = vmatprep.subr.mxu0 0.0
        %236 = vmatpush1.msra.mxu0 0.0
        %237 = vmatprep.subr.mxu0 0.0
        %238 = vmatpush1.msra.mxu0 0.0
        %239 = vmatprep.subr.mxu0 0.0
        %240 = vmatpush1.msra.mxu0 0.0
        %241 = vmatprep.subr.mxu0 0.0
        %242 = vmatpush1.msra.mxu0 0.0
        %243 = vmatprep.subr.mxu0 0.0
        %244 = vmatpush1.msra.mxu0 0.0
        %245 = vmatprep.subr.mxu0 0.0
        %246 = vmatpush1.msra.mxu0 0.0
        %247 = vmatprep.subr.mxu0 0.0
        %248 = vmatpush1.msra.mxu0 0.0
        %249 = vmatprep.subr.mxu0 0.0
        %250 = vmatpush1.msra.mxu0 0.0
        %251 = vmatprep.subr.mxu0 0.0
        %252 = vmatpush1.msra.mxu0 0.0
        %253 = vmatprep.subr.mxu0 0.0
        %254 = vmatpush1.msra.mxu0 0.0
        %255 = vmatprep.subr.mxu0 0.0
        %256 = vmatpush1.msra.mxu0 0.0
        %257 = vmatprep.subr.mxu0 0.0
        %258 = vmatpush1.msra.mxu0 0.0
        %259 = vmatprep.subr.mxu0 0.0
        %260 = vmatpush1.msra.mxu0 0.0
        %261 = vmatprep.subr.mxu0 0.0
        %262 = vmatpush1.msra.mxu0 0.0
        %263 = vmatprep.subr.mxu0 0.0
        %264 = vmatpush1.msra.mxu0 0.0
        %265 = vmatprep.subr.mxu0 0.0
        %266 = vmatpush1.msra.mxu0 0.0
        %267 = vmatprep.subr.mxu0 0.0
        %268 = vmatpush1.msra.mxu0 0.0
        %269 = vmatprep.subr.mxu0 0.0
        %270 = vmatpush1.msra.mxu0 0.0
        %271 = vmatprep.subr.mxu0 0.0
        %272 = vmatpush1.msra.mxu0 0.0
        %273 = vmatprep.subr.mxu0 0.0
        %274 = vmatpush1.msra.mxu0 0.0
        %275 = vmatprep.subr.mxu0 0.0
        %276 = vmatpush1.msra.mxu0 0.0
        %277 = vmatprep.subr.mxu0 0.0
        %278 = vmatpush1.msra.mxu0 0.0
        %279 = vmatprep.subr.mxu0 0.0
        %280 = vmatpush1.msra.mxu0 0.0
        %281 = vmatprep.subr.mxu0 0.0
        %282 = vmatpush1.msra.mxu0 0.0
        %283 = vmatprep.subr.mxu0 0.0
        %284 = vmatpush1.msra.mxu0 0.0
        %285 = vmatprep.subr.mxu0 0.0
        %286 = vmatpush1.msra.mxu0 0.0
        %287 = vmatprep.subr.mxu0 0.0
        %288 = vmatpush1.msra.mxu0 0.0
        %289 = vmatprep.mubr.f32.mxu0 0.0
        %290 = vmatmul.mubr.f32.gmra.mrb[0].mxu0 %v219
        %v291 = vpop.f32.mrb[0].mxu0
        %v292 = vadd.f32 0.0, %v291
        %v293 = vpop.f32.mrb[0].mxu0
        %294 = vdwg.mxu0
        %295 = vst [vmem:[#allocation2] sm:$0xff] %v292
        %v296 = vld [vmem:[#allocation2] sm:$0xff]
        %s297 = scalar_lea.vmem %s1, 8
        %v298 = vld [vmem:[%s297] sm:$0xff]
        %v299 = vcombine.high %v215, %v215
        %300 = vrot.lane.b32.xlu0 %v215, 127
        %v301 = vpop.permute.xlu0 %300
        %302 = vrot.lane.b32.xlu0 %v299, 127
        %v303 = vpop.permute.xlu0 %302
        %vm304 = vcmask 1039360
        %v305 = vsel %vm304, %v301, %v303
        %v307 = vsel %vm217, %v298, 0
        %v309 = vsel %vm221, %v305, 0
        %311 = vmatprep.subr.mxu0 0.0
        %312 = vmatpush1.msra.mxu0 %v309
        %313 = vmatprep.subr.mxu0 0.0
        %314 = vmatpush1.msra.mxu0 0.0
        %315 = vmatprep.subr.mxu0 0.0
        %316 = vmatpush1.msra.mxu0 0.0
        %317 = vmatprep.subr.mxu0 0.0
        %318 = vmatpush1.msra.mxu0 0.0
        %319 = vmatprep.subr.mxu0 0.0
        %320 = vmatpush1.msra.mxu0 0.0
        %321 = vmatprep.subr.mxu0 0.0
        %322 = vmatpush1.msra.mxu0 0.0
        %323 = vmatprep.subr.mxu0 0.0
        %324 = vmatpush1.msra.mxu0 0.0
        %325 = vmatprep.subr.mxu0 0.0
        %326 = vmatpush1.msra.mxu0 0.0
        %327 = vmatprep.subr.mxu0 0.0
        %328 = vmatpush1.msra.mxu0 0.0
        %329 = vmatprep.subr.mxu0 0.0
        %330 = vmatpush1.msra.mxu0 0.0
        %331 = vmatprep.subr.mxu0 0.0
        %332 = vmatpush1.msra.mxu0 0.0
        %333 = vmatprep.subr.mxu0 0.0
        %334 = vmatpush1.msra.mxu0 0.0
        %335 = vmatprep.subr.mxu0 0.0
        %336 = vmatpush1.msra.mxu0 0.0
        %337 = vmatprep.subr.mxu0 0.0
        %338 = vmatpush1.msra.mxu0 0.0
        %339 = vmatprep.subr.mxu0 0.0
        %340 = vmatpush1.msra.mxu0 0.0
        %341 = vmatprep.subr.mxu0 0.0
        %342 = vmatpush1.msra.mxu0 0.0
        %343 = vmatprep.subr.mxu0 0.0
        %344 = vmatpush1.msra.mxu0 0.0
        %345 = vmatprep.subr.mxu0 0.0
        %346 = vmatpush1.msra.mxu0 0.0
        %347 = vmatprep.subr.mxu0 0.0
        %348 = vmatpush1.msra.mxu0 0.0
        %349 = vmatprep.subr.mxu0 0.0
        %350 = vmatpush1.msra.mxu0 0.0
        %351 = vmatprep.subr.mxu0 0.0
        %352 = vmatpush1.msra.mxu0 0.0
        %353 = vmatprep.subr.mxu0 0.0
        %354 = vmatpush1.msra.mxu0 0.0
        %355 = vmatprep.subr.mxu0 0.0
        %356 = vmatpush1.msra.mxu0 0.0
        %357 = vmatprep.subr.mxu0 0.0
        %358 = vmatpush1.msra.mxu0 0.0
        %359 = vmatprep.subr.mxu0 0.0
        %360 = vmatpush1.msra.mxu0 0.0
        %361 = vmatprep.subr.mxu0 0.0
        %362 = vmatpush1.msra.mxu0 0.0
        %363 = vmatprep.subr.mxu0 0.0
        %364 = vmatpush1.msra.mxu0 0.0
        %365 = vmatprep.subr.mxu0 0.0
        %366 = vmatpush1.msra.mxu0 0.0
        %367 = vmatprep.subr.mxu0 0.0
        %368 = vmatpush1.msra.mxu0 0.0
        %369 = vmatprep.subr.mxu0 0.0
        %370 = vmatpush1.msra.mxu0 0.0
        %371 = vmatprep.subr.mxu0 0.0
        %372 = vmatpush1.msra.mxu0 0.0
        %373 = vmatprep.subr.mxu0 0.0
        %374 = vmatpush1.msra.mxu0 0.0
        %375 = vmatprep.mubr.f32.mxu0 0.0
        %376 = vmatmul.mubr.f32.gmra.mrb[0].mxu0 %v307
        %v377 = vpop.f32.mrb[0].mxu0
        %v378 = vadd.f32 0.0, %v377
        %v379 = vpop.f32.mrb[0].mxu0
        %380 = vdwg.mxu0
        %v381 = vadd.f32 %v296, %v378
        %382 = vst [vmem:[#allocation2] sm:$0xff] %v381
        %v383 = vld [vmem:[#allocation2] sm:$0xff]
        %s384 = scalar_lea.vmem %s1, 16
        %v385 = vld [vmem:[%s384] sm:$0xff]
        %386 = vrot.lane.b32.xlu0 %v215, 126
        %v387 = vpop.permute.xlu0 %386
        %388 = vrot.lane.b32.xlu0 %v299, 126
        %v389 = vpop.permute.xlu0 %388
        %vm390 = vcmask 1031168
        %v391 = vsel %vm390, %v387, %v389
        %v393 = vsel %vm217, %v385, 0
        %v395 = vsel %vm221, %v391, 0
        %397 = vmatprep.subr.mxu0 0.0
        %398 = vmatpush1.msra.mxu0 %v395
        %399 = vmatprep.subr.mxu0 0.0
        %400 = vmatpush1.msra.mxu0 0.0
        %401 = vmatprep.subr.mxu0 0.0
        %402 = vmatpush1.msra.mxu0 0.0
        %403 = vmatprep.subr.mxu0 0.0
        %404 = vmatpush1.msra.mxu0 0.0
        %405 = vmatprep.subr.mxu0 0.0
        %406 = vmatpush1.msra.mxu0 0.0
        %407 = vmatprep.subr.mxu0 0.0
        %408 = vmatpush1.msra.mxu0 0.0
        %409 = vmatprep.subr.mxu0 0.0
        %410 = vmatpush1.msra.mxu0 0.0
        %411 = vmatprep.subr.mxu0 0.0
        %412 = vmatpush1.msra.mxu0 0.0
        %413 = vmatprep.subr.mxu0 0.0
        %414 = vmatpush1.msra.mxu0 0.0
        %415 = vmatprep.subr.mxu0 0.0
        %416 = vmatpush1.msra.mxu0 0.0
        %417 = vmatprep.subr.mxu0 0.0
        %418 = vmatpush1.msra.mxu0 0.0
        %419 = vmatprep.subr.mxu0 0.0
        %420 = vmatpush1.msra.mxu0 0.0
        %421 = vmatprep.subr.mxu0 0.0
        %422 = vmatpush1.msra.mxu0 0.0
        %423 = vmatprep.subr.mxu0 0.0
        %424 = vmatpush1.msra.mxu0 0.0
        %425 = vmatprep.subr.mxu0 0.0
        %426 = vmatpush1.msra.mxu0 0.0
        %427 = vmatprep.subr.mxu0 0.0
        %428 = vmatpush1.msra.mxu0 0.0
        %429 = vmatprep.subr.mxu0 0.0
        %430 = vmatpush1.msra.mxu0 0.0
        %431 = vmatprep.subr.mxu0 0.0
        %432 = vmatpush1.msra.mxu0 0.0
        %433 = vmatprep.subr.mxu0 0.0
        %434 = vmatpush1.msra.mxu0 0.0
        %435 = vmatprep.subr.mxu0 0.0
        %436 = vmatpush1.msra.mxu0 0.0
        %437 = vmatprep.subr.mxu0 0.0
        %438 = vmatpush1.msra.mxu0 0.0
        %439 = vmatprep.subr.mxu0 0.0
        %440 = vmatpush1.msra.mxu0 0.0
        %441 = vmatprep.subr.mxu0 0.0
        %442 = vmatpush1.msra.mxu0 0.0
        %443 = vmatprep.subr.mxu0 0.0
        %444 = vmatpush1.msra.mxu0 0.0
        %445 = vmatprep.subr.mxu0 0.0
        %446 = vmatpush1.msra.mxu0 0.0
        %447 = vmatprep.subr.mxu0 0.0
        %448 = vmatpush1.msra.mxu0 0.0
        %449 = vmatprep.subr.mxu0 0.0
        %450 = vmatpush1.msra.mxu0 0.0
        %451 = vmatprep.subr.mxu0 0.0
        %452 = vmatpush1.msra.mxu0 0.0
        %453 = vmatprep.subr.mxu0 0.0
        %454 = vmatpush1.msra.mxu0 0.0
        %455 = vmatprep.subr.mxu0 0.0
        %456 = vmatpush1.msra.mxu0 0.0
        %457 = vmatprep.subr.mxu0 0.0
        %458 = vmatpush1.msra.mxu0 0.0
        %459 = vmatprep.subr.mxu0 0.0
        %460 = vmatpush1.msra.mxu0 0.0
        %461 = vmatprep.mubr.f32.mxu0 0.0
        %462 = vmatmul.mubr.f32.gmra.mrb[0].mxu0 %v393
        %v463 = vpop.f32.mrb[0].mxu0
        %v464 = vadd.f32 0.0, %v463
        %v465 = vpop.f32.mrb[0].mxu0
        %466 = vdwg.mxu0
        %v467 = vadd.f32 %v383, %v464
        %468 = vst [vmem:[#allocation2] sm:$0xff] %v467
        %v469 = vld [vmem:[#allocation2] sm:$0xff]
        %v470 = vld [vmem:[%s2] sm:$0xff]
        %472 = vset.pattern.permute.xlu0 0
        %473 = vperm.xlu0 %472, %v470
        %v474 = vpop.permute.xlu0 %473
        %v476 = vmul.f32 %v469, %v474
        %v477 = vld [vmem:[%s3] sm:$0xff]
        %479 = vset.pattern.permute.xlu0 0
        %480 = vperm.xlu0 %479, %v477
        %v481 = vpop.permute.xlu0 %480
        %v483 = vadd.f32 %v476, %v481
        %vm484 = vcmp.gt.f32.partialorder %v483, 0.0
        %v485 = vmul.f32 %v483, 0.2
        %v486 = vsel %vm484, %v483, %v485
        %487 = vst [vmem:[%s204] sm:$0xff] %v486
        %s488 = sand.u32 %s129, 1
        %s489 = scalar_lea.sflag [#allocation4], %s488
        %s490 = sand.u32 %s129, 1
        %s491 = smul.addr %s490, 8
        %s492 = scalar_lea.vmem [#allocation3], %s491
        // Predicated region
        $region37: #{conv_block_forward.3} parent=35 // pred_check
          %p493 = pneg %p139
        $region38: #{conv_block_forward.3} parent=35 // pred_check_branch
          %495 = sbr.rel (%p493) target = $region40
        $region39: #{conv_block_forward.3} parent=35 // pred_region
          %s497 = ssub.s32 128, 128
          %498 = vsyncadd %s489, %s497
          %s499 = sadd.s32 %s23, %s22
          %s500 = smul.addr %s499, 128
          %s501 = scalar_lea.hbm %s4, %s500
          %s503 = sshll.u32 %s492, 4
          %s504 = int_to_ptr.vmem [resolvable:$true] %s503
          %506 = dma.vmem_to_hbm [thread:$0]  %s504, 128, %s501, %s489
        $region40: #{conv_block_forward.3} parent=35 // pred_fallthru
          _
      $region36: #{conv_block_forward.3} parent=5 // pred_fallthru
        _
      %p507 = scmp.le.s32.totalorder 2, %s13
      // Predicated region
      $region41: #{conv_block_forward.3} parent=5 // pred_check
        %p508 = pneg %p507
      $region42: #{conv_block_forward.3} parent=5 // pred_check_branch
        %510 = sbr.rel (%p508) target = $region44
      $region43: #{conv_block_forward.3} parent=5 // pred_region
        %s511 = ssub.s32 %s13, 2
        // Predicated region
        $region45: #{conv_block_forward.3} parent=43 // pred_check
          %p512 = pneg %p145
        $region46: #{conv_block_forward.3} parent=43 // pred_check_branch
          %514 = sbr.rel (%p512) target = $region48
        $region47: #{conv_block_forward.3} parent=43 // pred_region
          %s515 = sand.u32 %s130, 1
          %s516 = scalar_lea.sflag [#allocation4], %s515
          %s517 = sand.u32 %s130, 1
          %s518 = smul.addr %s517, 8
          %s519 = scalar_lea.vmem [#allocation3], %s518
          %520 = dma.done %s516, 128
        $region48: #{conv_block_forward.3} parent=43 // pred_fallthru
          _
      $region44: #{conv_block_forward.3} parent=5 // pred_fallthru
        _
    $region6: #{conv_block_forward.3} parent=1 // loop_footer
      %s17 = sadd.s32 1, %s13
    $region7: #{conv_block_forward.3} parent=1 // loop_footer_branch
      %12 = sbr.rel target = $region3
    $region8: #{conv_block_forward.3} parent=1 // loop_exit
      _
    %521 = vsyncpa [#allocation4], 1
    %s522 = scalar_lea.sflag [#allocation4], 1
    %523 = vsyncpa %s522, 1

</llo_original>
